<compile_context>
chip_gen: v5e
topology: v5e:2x2
jax: 0.10.0
libtpu: 0.0.40
codegen_flags: <defaults>
</compile_context>

<pallas_src>
import functools

import jax
import jax.numpy as jnp
from jax.experimental import pallas as pl
from jax.experimental.pallas import tpu as pltpu

# ---------------- problem configuration (small, deterministic) --------------
B = 2            # batch of molecules
N = 8            # padded number of atoms per molecule
ATOM_FDIM = 16   # atom feature dim (module default is 75; small shape chosen)
BOND_FDIM = 6    # bond feature dim (unused by the forward compute, as in ref)
DEPTH = 3        # args.depth  (number of message-passing steps)
HIDDEN = 32      # args.hidden_size (unused by the forward compute, as in ref)

LANES = 128      # TPU lane width
SUBLANES = 8     # TPU sublane count
TILE_ROWS = 128  # target atom rows per grid step (=> M >= 128 for every dot)


def _round_up(x, m):
    return (x + m - 1) // m * m


# ------------------------------ Pallas kernel -------------------------------
def mpnn_kernel(adj_ref, h_ref, wh_ref, wm_ref, bu_ref, wn_ref, bn_ref,
                out_ref, *, depth, n_atoms):
    """One molecule tile (TILE_M molecules = R atom rows) per grid step.

    adj_ref : (R, R)    per-tile block-diagonal adjacency (f32, 0/1)
    h_ref   : (R, Fp)   initial atom features (zero-padded lanes/rows)
    wh_ref  : (Fp, Fp)  U weight, h-half, transposed & zero-padded
    wm_ref  : (Fp, Fp)  U weight, m-half, transposed & zero-padded
    bu_ref  : (1, Fp)   U bias (zero-padded)
    wn_ref  : (1, Fp)   NN weight row (zero-padded)
    bn_ref  : (1,)      NN bias (SMEM scalar)
    out_ref : (TM, 128) per-molecule prediction broadcast across lanes
    """
    adj = adj_ref[...]                                    # (R, R)
    h = h_ref[...]                                        # (R, Fp)
    wh = wh_ref[...]                                      # (Fp, Fp)
    wm = wm_ref[...]                                      # (Fp, Fp)
    # hoist the bias broadcast out of the (unrolled) depth loop
    bu_b = jnp.broadcast_to(bu_ref[...], h.shape)         # (R, Fp)

    # message passing + update, unrolled over depth (small & static)
    for _ in range(depth):
        m = jnp.dot(adj, h, preferred_element_type=jnp.float32)      # (R, Fp)
        # relu(concat([h, m]) @ W_U.T + b) == relu(h @ W_h + m @ W_m + b)
        # (no lane concatenate, every contraction is K = 128; h @ W_h is off
        #  the adj@h -> m@W_m critical path)
        pre = (jnp.dot(h, wh, preferred_element_type=jnp.float32)
               + jnp.dot(m, wm, preferred_element_type=jnp.float32)
               + bu_b)
        h = jnp.maximum(pre, 0.0)                                     # ReLU

    # readout: tile-aligned sublane-group sum over atoms (N == SUBLANES so the
    # reshape is a no-op retiling), then Linear(F -> 1) as VPU mul + XLU lane
    # reduce.  Padded molecules occupy whole groups -> no masking needed; they
    # are sliced off in the wrapper.
    rows, fp = h.shape
    mols = rows // n_atoms
    mol_vec = jnp.sum(h.reshape(mols, n_atoms, fp), axis=1)          # (TM, Fp)
    pred = jnp.sum(mol_vec * wn_ref[...], axis=-1, keepdims=True)    # (TM, 1)
    pred = pred + bn_ref[0]
    # lane-dense store: broadcast the scalar prediction across all 128 lanes
    out_ref[...] = jnp.broadcast_to(pred, out_ref.shape)


# ---------------------- one-time packing (hoisted) ---------------------------
def pack_params(wu, bu, wn, bn, *, lanes=LANES):
    """Pack U / NN parameters once (outside the per-call forward path)."""
    f = wu.shape[0]
    assert wu.shape == (f, 2 * f), wu.shape
    fp = _round_up(f, lanes)
    f32 = jnp.float32
    # split-transposed halves of the U weight: concat([h,m]) @ wu.T ==
    #   h @ wu[:, :F].T + m @ wu[:, F:].T
    w_h = jnp.zeros((fp, fp), f32).at[:f, :f].set(wu[:, :f].T.astype(f32))
    w_m = jnp.zeros((fp, fp), f32).at[:f, :f].set(wu[:, f:].T.astype(f32))
    bu_row = jnp.zeros((1, fp), f32).at[0, :f].set(bu.astype(f32))
    wn_row = jnp.zeros((1, fp), f32).at[0, :f].set(wn.reshape(f).astype(f32))
    bn_s = bn.reshape(1).astype(f32)
    return w_h, w_m, bu_row, wn_row, bn_s


def pack_graph(adj, atoms, *, tile_rows=TILE_ROWS, lanes=LANES):
    """Pack the batched graph once: per-tile block-diag adjacency + features."""
    b, n, f = atoms.shape
    # TODO(synk): if N is not a multiple of 8, fall back to a pooling matmul
    #             readout instead of the sublane-group sum.
    assert n % SUBLANES == 0, "readout sublane-group sum requires N % 8 == 0"
    tile_m = max(1, tile_rows // n)            # molecules per grid step
    r = tile_m * n                             # atom rows per grid step
    assert r % SUBLANES == 0
    fp = _round_up(f, lanes)
    bp = _round_up(b, tile_m)                  # pad batch to a tile multiple
    t = bp // tile_m                           # number of grid steps
    f32 = jnp.float32

    adj_p = jnp.pad(adj.astype(f32), ((0, bp - b), (0, 0), (0, 0)))
    atoms_p = jnp.pad(atoms.astype(f32), ((0, bp - b), (0, 0), (0, fp - f)))

    # per-tile block-diagonal adjacency: O(B * tile_m * N^2) (linear in batch),
    # instead of the old O((B*N)^2) whole-batch block-diagonal matrix.
    adj_t = adj_p.reshape(t, tile_m, n, n)
    eye_m = jnp.eye(tile_m, dtype=f32)
    adj_bd = jnp.einsum("tmij,mn->tminj", adj_t, eye_m).reshape(t, r, r)

    h0 = atoms_p.reshape(t * r, fp)
    return adj_bd, h0, tile_m


# ------------------------------ JAX wrapper ---------------------------------
def mpnn_forward(adj_bd, h0, w_h, w_m, bu_row, wn_row, bn_s, *,
                 n_mols, n_atoms, tile_m, depth=DEPTH):
    """Per-call forward: just the pallas_call + output slice (packing hoisted)."""
    t, r, _ = adj_bd.shape
    fp = h0.shape[1]

    out = pl.pallas_call(
        functools.partial(mpnn_kernel, depth=depth, n_atoms=n_atoms),
        out_shape=jax.ShapeDtypeStruct((t * tile_m, LANES), jnp.float32),
        grid=(t,),
        in_specs=[
            pl.BlockSpec((None, r, r), lambda i: (i, 0, 0)),    # adjacency tile
            pl.BlockSpec((r, fp), lambda i: (i, 0)),            # atom feature tile
            pl.BlockSpec((fp, fp), lambda i: (0, 0)),           # U weight (h half)
            pl.BlockSpec((fp, fp), lambda i: (0, 0)),           # U weight (m half)
            pl.BlockSpec((1, fp), lambda i: (0, 0)),            # U bias row
            pl.BlockSpec((1, fp), lambda i: (0, 0)),            # NN weight row
            pl.BlockSpec(memory_space=pltpu.MemorySpace.SMEM),  # NN bias scalar
        ],
        out_specs=pl.BlockSpec((tile_m, LANES), lambda i: (i, 0)),
        compiler_params=pltpu.CompilerParams(
            dimension_semantics=("parallel",)),                 # megacore-friendly
    )(adj_bd, h0, w_h, w_m, bu_row, wn_row, bn_s)

    # slice lane 0 of the first B rows -> (B, 1), matching torch Linear(F, 1)
    return out[:n_mols, 0:1]


# ------------------------- pure-JAX reference -------------------------------
def mpnn_reference(adj, atoms, wu, bu, wn, bn, *, depth=DEPTH):
    h = atoms
    for _ in range(depth):
        m = jnp.einsum("bij,bjf->bif", adj, h)
        hm = jnp.concatenate([h, m], axis=-1)                 # (B, N, 2F)
        h = jax.nn.relu(jnp.einsum("bnf,gf->bng", hm, wu) + bu)
    mol_vec = jnp.sum(h, axis=1)                              # (B, F)
    return mol_vec @ wn.T + bn                                # (B, 1)


# --------------------------------- main --------------------------------------
if __name__ == "__main__":
    key = jax.random.PRNGKey(0)
    k_adj, k_atom, k_wu, k_bu, k_wn, k_bn = jax.random.split(key, 6)

    # deterministic synthetic molecular graphs
    raw = jax.random.uniform(k_adj, (B, N, N))
    adj = (raw > 0.6).astype(jnp.float32)
    adj = jnp.maximum(adj, jnp.transpose(adj, (0, 2, 1)))     # undirected
    adj = adj * (1.0 - jnp.eye(N, dtype=jnp.float32))         # no self loops

    atoms = jax.random.normal(k_atom, (B, N, ATOM_FDIM), dtype=jnp.float32)

    # PyTorch-style Linear init: U(2F -> F), NN(F -> 1), uniform(+-1/sqrt(fan_in))
    lim_u = 1.0 / jnp.sqrt(2.0 * ATOM_FDIM)
    wu = jax.random.uniform(k_wu, (ATOM_FDIM, 2 * ATOM_FDIM),
                            minval=-lim_u, maxval=lim_u, dtype=jnp.float32)
    bu = jax.random.uniform(k_bu, (ATOM_FDIM,),
                            minval=-lim_u, maxval=lim_u, dtype=jnp.float32)
    lim_n = 1.0 / jnp.sqrt(float(ATOM_FDIM))
    wn = jax.random.uniform(k_wn, (1, ATOM_FDIM),
                            minval=-lim_n, maxval=lim_n, dtype=jnp.float32)
    bn = jax.random.uniform(k_bn, (1,),
                            minval=-lim_n, maxval=lim_n, dtype=jnp.float32)

    # one-time packing, hoisted out of the per-call forward path
    w_h, w_m, bu_row, wn_row, bn_s = pack_params(wu, bu, wn, bn)
    adj_bd, h0, tile_m = pack_graph(adj, atoms)

    out = mpnn_forward(adj_bd, h0, w_h, w_m, bu_row, wn_row, bn_s,
                       n_mols=B, n_atoms=N, tile_m=tile_m, depth=DEPTH)
    out = jax.block_until_ready(out)

    ref = mpnn_reference(adj, atoms, wu, bu, wn, bn, depth=DEPTH)
    assert out.shape == (B, 1), out.shape
    assert jnp.allclose(out, ref, atol=1e-4, rtol=1e-4), (out, ref)

    print("KERNEL_OK")
</pallas_src>

<mosaic_0001>
module attributes {stable_mosaic.version = 11 : i64} {
  func.func @mpnn_kernel(%arg0: i32, %arg1: memref<1x128x128xf32, #tpu.memory_space<vmem>>, %arg2: memref<128x128xf32, #tpu.memory_space<vmem>>, %arg3: memref<128x128xf32, #tpu.memory_space<vmem>>, %arg4: memref<128x128xf32, #tpu.memory_space<vmem>>, %arg5: memref<1x128xf32, #tpu.memory_space<vmem>>, %arg6: memref<1x128xf32, #tpu.memory_space<vmem>>, %arg7: memref<1xf32, #tpu.memory_space<smem>>, %arg8: memref<16x128xf32, #tpu.memory_space<vmem>>) attributes {dimension_semantics = [#tpu.dimension_semantics<parallel>], iteration_bounds = array<i64: 1>, scalar_prefetch = 0 : i64, scratch_operands = 0 : i64, tpu.core_type = #tpu.core_type<tc>, window_params = [{transform_indices = @transform_0, window_bounds = array<i64: 1, 128, 128>}, {transform_indices = @transform_1, window_bounds = array<i64: 128, 128>}, {pipeline_mode = #tpu.pipeline_mode<synchronous>, transform_indices = @transform_2, window_bounds = array<i64: 128, 128>}, {pipeline_mode = #tpu.pipeline_mode<synchronous>, transform_indices = @transform_3, window_bounds = array<i64: 128, 128>}, {pipeline_mode = #tpu.pipeline_mode<synchronous>, transform_indices = @transform_4, window_bounds = array<i64: 1, 128>}, {pipeline_mode = #tpu.pipeline_mode<synchronous>, transform_indices = @transform_5, window_bounds = array<i64: 1, 128>}, {transform_indices = @transform_6, window_bounds = array<i64: 1>}, {transform_indices = @transform_7, window_bounds = array<i64: 16, 128>}]} {
    %c0 = arith.constant 0 : index
    %c0_0 = arith.constant 0 : index
    %c0_1 = arith.constant 0 : index
    %0 = vector.load %arg1[%c0, %c0_0, %c0_1] : memref<1x128x128xf32, #tpu.memory_space<vmem>>, vector<1x128x128xf32>
    %1 = vector.shape_cast %0 : vector<1x128x128xf32> to vector<128x128xf32>
    %c0_2 = arith.constant 0 : index
    %c0_3 = arith.constant 0 : index
    %2 = vector.load %arg2[%c0_2, %c0_3] : memref<128x128xf32, #tpu.memory_space<vmem>>, vector<128x128xf32>
    %c0_4 = arith.constant 0 : index
    %c0_5 = arith.constant 0 : index
    %3 = vector.load %arg3[%c0_4, %c0_5] : memref<128x128xf32, #tpu.memory_space<vmem>>, vector<128x128xf32>
    %c0_6 = arith.constant 0 : index
    %c0_7 = arith.constant 0 : index
    %4 = vector.load %arg4[%c0_6, %c0_7] : memref<128x128xf32, #tpu.memory_space<vmem>>, vector<128x128xf32>
    %c0_8 = arith.constant 0 : index
    %c0_9 = arith.constant 0 : index
    %5 = vector.load %arg5[%c0_8, %c0_9] : memref<1x128xf32, #tpu.memory_space<vmem>>, vector<1x128xf32>
    %6 = vector.shape_cast %5 : vector<1x128xf32> to vector<1x128xf32>
    %7 = vector.broadcast %6 : vector<1x128xf32> to vector<128x128xf32>
    %cst = arith.constant dense<0.000000e+00> : vector<128x128xf32>
    %8 = tpu.matmul %1, %2, %cst {dimension_numbers = #tpu.dot_dimension_numbers<[1], [0], [0], [1], [0, 0, 1, 1], [], []>} : vector<128x128xf32>, vector<128x128xf32>, vector<128x128xf32> -> vector<128x128xf32>
    %cst_10 = arith.constant dense<0.000000e+00> : vector<128x128xf32>
    %9 = tpu.matmul %2, %3, %cst_10 {dimension_numbers = #tpu.dot_dimension_numbers<[1], [0], [0], [1], [0, 0, 1, 1], [], []>} : vector<128x128xf32>, vector<128x128xf32>, vector<128x128xf32> -> vector<128x128xf32>
    %cst_11 = arith.constant dense<0.000000e+00> : vector<128x128xf32>
    %10 = tpu.matmul %8, %4, %cst_11 {dimension_numbers = #tpu.dot_dimension_numbers<[1], [0], [0], [1], [0, 0, 1, 1], [], []>} : vector<128x128xf32>, vector<128x128xf32>, vector<128x128xf32> -> vector<128x128xf32>
    %11 = arith.addf %9, %10 : vector<128x128xf32>
    %12 = arith.addf %11, %7 : vector<128x128xf32>
    %cst_12 = arith.constant 0.000000e+00 : f32
    %13 = vector.broadcast %cst_12 : f32 to vector<128x128xf32>
    %14 = arith.maximumf %12, %13 : vector<128x128xf32>
    %cst_13 = arith.constant dense<0.000000e+00> : vector<128x128xf32>
    %15 = tpu.matmul %1, %14, %cst_13 {dimension_numbers = #tpu.dot_dimension_numbers<[1], [0], [0], [1], [0, 0, 1, 1], [], []>} : vector<128x128xf32>, vector<128x128xf32>, vector<128x128xf32> -> vector<128x128xf32>
    %cst_14 = arith.constant dense<0.000000e+00> : vector<128x128xf32>
    %16 = tpu.matmul %14, %3, %cst_14 {dimension_numbers = #tpu.dot_dimension_numbers<[1], [0], [0], [1], [0, 0, 1, 1], [], []>} : vector<128x128xf32>, vector<128x128xf32>, vector<128x128xf32> -> vector<128x128xf32>
    %cst_15 = arith.constant dense<0.000000e+00> : vector<128x128xf32>
    %17 = tpu.matmul %15, %4, %cst_15 {dimension_numbers = #tpu.dot_dimension_numbers<[1], [0], [0], [1], [0, 0, 1, 1], [], []>} : vector<128x128xf32>, vector<128x128xf32>, vector<128x128xf32> -> vector<128x128xf32>
    %18 = arith.addf %16, %17 : vector<128x128xf32>
    %19 = arith.addf %18, %7 : vector<128x128xf32>
    %cst_16 = arith.constant 0.000000e+00 : f32
    %20 = vector.broadcast %cst_16 : f32 to vector<128x128xf32>
    %21 = arith.maximumf %19, %20 : vector<128x128xf32>
    %cst_17 = arith.constant dense<0.000000e+00> : vector<128x128xf32>
    %22 = tpu.matmul %1, %21, %cst_17 {dimension_numbers = #tpu.dot_dimension_numbers<[1], [0], [0], [1], [0, 0, 1, 1], [], []>} : vector<128x128xf32>, vector<128x128xf32>, vector<128x128xf32> -> vector<128x128xf32>
    %cst_18 = arith.constant dense<0.000000e+00> : vector<128x128xf32>
    %23 = tpu.matmul %21, %3, %cst_18 {dimension_numbers = #tpu.dot_dimension_numbers<[1], [0], [0], [1], [0, 0, 1, 1], [], []>} : vector<128x128xf32>, vector<128x128xf32>, vector<128x128xf32> -> vector<128x128xf32>
    %cst_19 = arith.constant dense<0.000000e+00> : vector<128x128xf32>
    %24 = tpu.matmul %22, %4, %cst_19 {dimension_numbers = #tpu.dot_dimension_numbers<[1], [0], [0], [1], [0, 0, 1, 1], [], []>} : vector<128x128xf32>, vector<128x128xf32>, vector<128x128xf32> -> vector<128x128xf32>
    %25 = arith.addf %23, %24 : vector<128x128xf32>
    %26 = arith.addf %25, %7 : vector<128x128xf32>
    %cst_20 = arith.constant 0.000000e+00 : f32
    %27 = vector.broadcast %cst_20 : f32 to vector<128x128xf32>
    %28 = arith.maximumf %26, %27 : vector<128x128xf32>
    %29 = vector.shape_cast %28 : vector<128x128xf32> to vector<16x8x128xf32>
    %cst_21 = arith.constant dense<0.000000e+00> : vector<16x128xf32>
    %30 = vector.multi_reduction <add>, %29, %cst_21 [1] : vector<16x8x128xf32> to vector<16x128xf32>
    %c0_22 = arith.constant 0 : index
    %c0_23 = arith.constant 0 : index
    %31 = vector.load %arg6[%c0_22, %c0_23] : memref<1x128xf32, #tpu.memory_space<vmem>>, vector<1x128xf32>
    %32 = vector.broadcast %31 : vector<1x128xf32> to vector<16x128xf32>
    %33 = arith.mulf %30, %32 : vector<16x128xf32>
    %cst_24 = arith.constant dense<0.000000e+00> : vector<16xf32>
    %34 = vector.multi_reduction <add>, %33, %cst_24 [1] : vector<16x128xf32> to vector<16xf32>
    %35 = vector.shape_cast %34 : vector<16xf32> to vector<16x1xf32>
    %c0_25 = arith.constant 0 : index
    %36 = memref.load %arg7[%c0_25] : memref<1xf32, #tpu.memory_space<smem>>
    %37 = vector.broadcast %36 : f32 to vector<16x1xf32>
    %38 = arith.addf %35, %37 : vector<16x1xf32>
    %39 = vector.shape_cast %38 : vector<16x1xf32> to vector<16x1xf32>
    %40 = vector.broadcast %39 : vector<16x1xf32> to vector<16x128xf32>
    %c0_26 = arith.constant 0 : index
    %c0_27 = arith.constant 0 : index
    %41 = vector.load %arg8[%c0_26, %c0_27] : memref<16x128xf32, #tpu.memory_space<vmem>>, vector<16x128xf32>
    tpu.vector_store %arg8[%c0_26, %c0_27], %40 {strides = array<i32>} : memref<16x128xf32, #tpu.memory_space<vmem>>, vector<16x128xf32>,
    return
  }
  func.func @transform_0(%arg0: i32) -> (i32, i32, i32) {
    %c0_i32 = arith.constant 0 : i32
    %c0_i32_0 = arith.constant 0 : i32
    %c0_i32_1 = arith.constant 0 : i32
    return %arg0, %c0_i32, %c0_i32_0 : i32, i32, i32
  }
  func.func @transform_1(%arg0: i32) -> (i32, i32) {
    %c0_i32 = arith.constant 0 : i32
    %c0_i32_0 = arith.constant 0 : i32
    return %arg0, %c0_i32 : i32, i32
  }
  func.func @transform_2(%arg0: i32) -> (i32, i32) {
    %c0_i32 = arith.constant 0 : i32
    %c0_i32_0 = arith.constant 0 : i32
    %c0_i32_1 = arith.constant 0 : i32
    return %c0_i32, %c0_i32_0 : i32, i32
  }
  func.func @transform_3(%arg0: i32) -> (i32, i32) {
    %c0_i32 = arith.constant 0 : i32
    %c0_i32_0 = arith.constant 0 : i32
    %c0_i32_1 = arith.constant 0 : i32
    return %c0_i32, %c0_i32_0 : i32, i32
  }
  func.func @transform_4(%arg0: i32) -> (i32, i32) {
    %c0_i32 = arith.constant 0 : i32
    %c0_i32_0 = arith.constant 0 : i32
    %c0_i32_1 = arith.constant 0 : i32
    return %c0_i32, %c0_i32_0 : i32, i32
  }
  func.func @transform_5(%arg0: i32) -> (i32, i32) {
    %c0_i32 = arith.constant 0 : i32
    %c0_i32_0 = arith.constant 0 : i32
    %c0_i32_1 = arith.constant 0 : i32
    return %c0_i32, %c0_i32_0 : i32, i32
  }
  func.func @transform_6(%arg0: i32) -> i32 {
    %c0_i32 = arith.constant 0 : i32
    %c0_i32_0 = arith.constant 0 : i32
    return %c0_i32 : i32
  }
  func.func @transform_7(%arg0: i32) -> (i32, i32) {
    %c0_i32 = arith.constant 0 : i32
    %c0_i32_0 = arith.constant 0 : i32
    return %arg0, %c0_i32 : i32, i32
  }
}

</mosaic_0001>

<llo_original>
// kernel: tpu_custom_call.1
$region0: #{tpu_custom_call.1}
  #allocation0 [shape = 'u32[]', space=smem, size = 0x4, offset = 0x4, fixed_abs, tag = 'smem constant byte address 0x4 - core index']
  #allocation1 [shape = 'u32[72,128]{1,0:T(1,128)}', space=vmem, size = 0x9000, scoped, tag = 'internal scratch']
  #allocation2 [shape = 'f32[1]{0:T(128)S(6)}', space=smem, size = 0x200, scoped, tag = 'scoped memory for tpu_custom_call.1']
  %s0 = inlined_call_operand.hbm [shape: f32[1,128,128], index: 0, kind: input, shape index: {}]
  %s1 = inlined_call_operand.hbm [shape: f32[128,128], index: 1, kind: input, shape index: {}]
  %s2 = inlined_call_operand.hbm [shape: f32[128,128], index: 2, kind: input, shape index: {}]
  %s3 = inlined_call_operand.hbm [shape: f32[128,128], index: 3, kind: input, shape index: {}]
  %s4 = inlined_call_operand.vmem [shape: f32[1,128], index: 4, kind: input, shape index: {}]
  %s5 = inlined_call_operand.vmem [shape: f32[1,128], index: 5, kind: input, shape index: {}]
  %s6 = inlined_call_operand.<no memory space> [shape: f32[1], index: 6, kind: input, shape index: {}]
  %s7 = inlined_call_operand.hbm [shape: f32[16,128], index: 7, kind: output, shape index: {}]
  %s8 = sld [smem:[#allocation0]]
  $region54: #{tpu_custom_call.1} parent=0
    _
  %s10 = ssub.s32 1, %s8
  %s11 = scalar_select 0, %s10, %s8
  %12 = sst [smem:[#allocation2]] %s6
  $region1: #{tpu_custom_call.1} parent=0
    #allocation3 [shape = 'u8[65536]{0}', space=vmem, size = 0x10000, scoped, tag = 'input window, operand 0, single buffered']
    #allocation4 [shape = 's32[1]{0}', space=sflag, size = 0x4, scoped, tag = 'scoped memory for tpu_custom_call.1']
    #allocation5 [shape = 's32[1]{0}', space=sflag, size = 0x4, scoped, tag = 'scoped memory for tpu_custom_call.1']
    #allocation6 [shape = 'u8[65536]{0}', space=vmem, size = 0x10000, scoped, tag = 'input window, operand 1, single buffered']
    #allocation7 [shape = 's32[1]{0}', space=sflag, size = 0x4, scoped, tag = 'scoped memory for tpu_custom_call.1']
    #allocation8 [shape = 'u8[65536]{0}', space=vmem, size = 0x10000, scoped, tag = 'input window, operand 2, single buffered']
    #allocation9 [shape = 'u8[65536]{0}', space=vmem, size = 0x10000, scoped, tag = 'input window, operand 3, single buffered']
    #allocation10 [shape = 's32[1]{0}', space=sflag, size = 0x4, scoped, tag = 'scoped memory for tpu_custom_call.1']
    #allocation11 [shape = 'u8[8192]{0}', space=vmem, size = 0x2000, scoped, tag = 'output window, operand 0, single buffered']
    %13 = vsyncpa [#allocation4], 0
    %14 = vsyncpa [#allocation7], 0
    %15 = vsyncpa [#allocation10], 0
    %16 = vsyncpa [#allocation5], 0
    // Predicated region
    $region2: #{tpu_custom_call.1} parent=1 // pred_check
      _
    $region3: #{tpu_custom_call.1} parent=1 // pred_check_branch
      %18 = sbr.rel (0) target = $region5
    $region4: #{tpu_custom_call.1} parent=1 // pred_region
      %20 = vsyncadd [#allocation4], 0
      %s21 = sshll.u32 %s0, 4
      %s22 = int_to_ptr.hbm [resolvable:$true] %s21
      %s23 = sshll.u32 [#allocation3], 4
      %s24 = int_to_ptr.vmem [resolvable:$true] %s23
      %29 = dma.hbm_to_vmem [thread:$0]  %s22, 2048, %s24, [#allocation4], 128, 128, 8
    $region5: #{tpu_custom_call.1} parent=1 // pred_fallthru
      _
    // Predicated region
    $region6: #{tpu_custom_call.1} parent=1 // pred_check
      _
    $region7: #{tpu_custom_call.1} parent=1 // pred_check_branch
      %31 = sbr.rel (0) target = $region9
    $region8: #{tpu_custom_call.1} parent=1 // pred_region
      %33 = vsyncadd [#allocation7], 0
      %s34 = sshll.u32 %s1, 4
      %s35 = int_to_ptr.hbm [resolvable:$true] %s34
      %s36 = sshll.u32 [#allocation6], 4
      %s37 = int_to_ptr.vmem [resolvable:$true] %s36
      %42 = dma.hbm_to_vmem [thread:$0]  %s35, 2048, %s37, [#allocation7], 128, 128, 8
    $region9: #{tpu_custom_call.1} parent=1 // pred_fallthru
      _
    // Predicated region
    $region10: #{tpu_custom_call.1} parent=1 // pred_check
      _
    $region11: #{tpu_custom_call.1} parent=1 // pred_check_branch
      %44 = sbr.rel (0) target = $region13
    $region12: #{tpu_custom_call.1} parent=1 // pred_region
      %46 = vsyncadd [#allocation7], 0
      %s47 = sshll.u32 %s2, 4
      %s48 = int_to_ptr.hbm [resolvable:$true] %s47
      %s49 = sshll.u32 [#allocation8], 4
      %s50 = int_to_ptr.vmem [resolvable:$true] %s49
      %55 = dma.hbm_to_vmem [thread:$0]  %s48, 2048, %s50, [#allocation7], 128, 128, 8
    $region13: #{tpu_custom_call.1} parent=1 // pred_fallthru
      _
    // Predicated region
    $region14: #{tpu_custom_call.1} parent=1 // pred_check
      _
    $region15: #{tpu_custom_call.1} parent=1 // pred_check_branch
      %57 = sbr.rel (0) target = $region17
    $region16: #{tpu_custom_call.1} parent=1 // pred_region
      %59 = vsyncadd [#allocation10], 0
      %s60 = sshll.u32 %s3, 4
      %s61 = int_to_ptr.hbm [resolvable:$true] %s60
      %s62 = sshll.u32 [#allocation9], 4
      %s63 = int_to_ptr.vmem [resolvable:$true] %s62
      %68 = dma.hbm_to_vmem [thread:$0]  %s61, 2048, %s63, [#allocation10], 128, 128, 8
    $region17: #{tpu_custom_call.1} parent=1 // pred_fallthru
      _
    // Predicated region
    $region18: #{tpu_custom_call.1} parent=1 // pred_check
      _
    $region19: #{tpu_custom_call.1} parent=1 // pred_check_branch
      %70 = sbr.rel (0) target = $region21
    $region20: #{tpu_custom_call.1} parent=1 // pred_region
      _
    $region21: #{tpu_custom_call.1} parent=1 // pred_fallthru
      _
    // Predicated region
    $region22: #{tpu_custom_call.1} parent=1 // pred_check
      _
    $region23: #{tpu_custom_call.1} parent=1 // pred_check_branch
      %72 = sbr.rel (0) target = $region25
    $region24: #{tpu_custom_call.1} parent=1 // pred_region
      _
    $region25: #{tpu_custom_call.1} parent=1 // pred_fallthru
      _
    // Predicated region
    $region26: #{tpu_custom_call.1} parent=1 // pred_check
      _
    $region27: #{tpu_custom_call.1} parent=1 // pred_check_branch
      %74 = sbr.rel (0) target = $region29
    $region28: #{tpu_custom_call.1} parent=1 // pred_region
      _
    $region29: #{tpu_custom_call.1} parent=1 // pred_fallthru
      _
    // Predicated region
    $region30: #{tpu_custom_call.1} parent=1 // pred_check
      _
    $region31: #{tpu_custom_call.1} parent=1 // pred_check_branch
      %76 = sbr.rel (0) target = $region33
    $region32: #{tpu_custom_call.1} parent=1 // pred_region
      %78 = dma.done [#allocation4], 2048
    $region33: #{tpu_custom_call.1} parent=1 // pred_fallthru
      _
    // Predicated region
    $region34: #{tpu_custom_call.1} parent=1 // pred_check
      _
    $region35: #{tpu_custom_call.1} parent=1 // pred_check_branch
      %80 = sbr.rel (0) target = $region37
    $region36: #{tpu_custom_call.1} parent=1 // pred_region
      %82 = dma.done [#allocation7], 2048
    $region37: #{tpu_custom_call.1} parent=1 // pred_fallthru
      _
    // Predicated region
    $region38: #{tpu_custom_call.1} parent=1 // pred_check
      _
    $region39: #{tpu_custom_call.1} parent=1 // pred_check_branch
      %84 = sbr.rel (0) target = $region41
    $region40: #{tpu_custom_call.1} parent=1 // pred_region
      %86 = dma.done [#allocation7], 2048
    $region41: #{tpu_custom_call.1} parent=1 // pred_fallthru
      _
    // Predicated region
    $region42: #{tpu_custom_call.1} parent=1 // pred_check
      _
    $region43: #{tpu_custom_call.1} parent=1 // pred_check_branch
      %88 = sbr.rel (0) target = $region45
    $region44: #{tpu_custom_call.1} parent=1 // pred_region
      %90 = dma.done [#allocation10], 2048
    $region45: #{tpu_custom_call.1} parent=1 // pred_fallthru
      _
    %v91 = vld [vmem:[#allocation3] sm:$0xff]
    %v92 = vld [vmem:[#allocation3 + $0x8] sm:$0xff]
    %v93 = vld [vmem:[#allocation3 + $0x10] sm:$0xff]
    %v94 = vld [vmem:[#allocation3 + $0x18] sm:$0xff]
    %v95 = vld [vmem:[#allocation3 + $0x20] sm:$0xff]
    %v96 = vld [vmem:[#allocation3 + $0x28] sm:$0xff]
    %v97 = vld [vmem:[#allocation3 + $0x30] sm:$0xff]
    %v98 = vld [vmem:[#allocation3 + $0x38] sm:$0xff]
    %v99 = vld [vmem:[#allocation3 + $0x40] sm:$0xff]
    %v100 = vld [vmem:[#allocation3 + $0x48] sm:$0xff]
    %v101 = vld [vmem:[#allocation3 + $0x50] sm:$0xff]
    %v102 = vld [vmem:[#allocation3 + $0x58] sm:$0xff]
    %v103 = vld [vmem:[#allocation3 + $0x60] sm:$0xff]
    %v104 = vld [vmem:[#allocation3 + $0x68] sm:$0xff]
    %v105 = vld [vmem:[#allocation3 + $0x70] sm:$0xff]
    %v106 = vld [vmem:[#allocation3 + $0x78] sm:$0xff]
    %v107 = vld [vmem:[#allocation6] sm:$0xff]
    %v108 = vld [vmem:[#allocation6 + $0x8] sm:$0xff]
    %v109 = vld [vmem:[#allocation6 + $0x10] sm:$0xff]
    %v110 = vld [vmem:[#allocation6 + $0x18] sm:$0xff]
    %v111 = vld [vmem:[#allocation6 + $0x20] sm:$0xff]
    %v112 = vld [vmem:[#allocation6 + $0x28] sm:$0xff]
    %v113 = vld [vmem:[#allocation6 + $0x30] sm:$0xff]
    %v114 = vld [vmem:[#allocation6 + $0x38] sm:$0xff]
    %v115 = vld [vmem:[#allocation6 + $0x40] sm:$0xff]
    %v116 = vld [vmem:[#allocation6 + $0x48] sm:$0xff]
    %v117 = vld [vmem:[#allocation6 + $0x50] sm:$0xff]
    %v118 = vld [vmem:[#allocation6 + $0x58] sm:$0xff]
    %v119 = vld [vmem:[#allocation6 + $0x60] sm:$0xff]
    %v120 = vld [vmem:[#allocation6 + $0x68] sm:$0xff]
    %v121 = vld [vmem:[#allocation6 + $0x70] sm:$0xff]
    %v122 = vld [vmem:[#allocation6 + $0x78] sm:$0xff]
    %v123 = vld [vmem:[#allocation8] sm:$0xff]
    %v124 = vld [vmem:[#allocation8 + $0x8] sm:$0xff]
    %v125 = vld [vmem:[#allocation8 + $0x10] sm:$0xff]
    %v126 = vld [vmem:[#allocation8 + $0x18] sm:$0xff]
    %v127 = vld [vmem:[#allocation8 + $0x20] sm:$0xff]
    %v128 = vld [vmem:[#allocation8 + $0x28] sm:$0xff]
    %v129 = vld [vmem:[#allocation8 + $0x30] sm:$0xff]
    %v130 = vld [vmem:[#allocation8 + $0x38] sm:$0xff]
    %v131 = vld [vmem:[#allocation8 + $0x40] sm:$0xff]
    %v132 = vld [vmem:[#allocation8 + $0x48] sm:$0xff]
    %v133 = vld [vmem:[#allocation8 + $0x50] sm:$0xff]
    %v134 = vld [vmem:[#allocation8 + $0x58] sm:$0xff]
    %v135 = vld [vmem:[#allocation8 + $0x60] sm:$0xff]
    %v136 = vld [vmem:[#allocation8 + $0x68] sm:$0xff]
    %v137 = vld [vmem:[#allocation8 + $0x70] sm:$0xff]
    %v138 = vld [vmem:[#allocation8 + $0x78] sm:$0xff]
    %v139 = vld [vmem:[#allocation9] sm:$0xff]
    %v140 = vld [vmem:[#allocation9 + $0x8] sm:$0xff]
    %v141 = vld [vmem:[#allocation9 + $0x10] sm:$0xff]
    %v142 = vld [vmem:[#allocation9 + $0x18] sm:$0xff]
    %v143 = vld [vmem:[#allocation9 + $0x20] sm:$0xff]
    %v144 = vld [vmem:[#allocation9 + $0x28] sm:$0xff]
    %v145 = vld [vmem:[#allocation9 + $0x30] sm:$0xff]
    %v146 = vld [vmem:[#allocation9 + $0x38] sm:$0xff]
    %v147 = vld [vmem:[#allocation9 + $0x40] sm:$0xff]
    %v148 = vld [vmem:[#allocation9 + $0x48] sm:$0xff]
    %v149 = vld [vmem:[#allocation9 + $0x50] sm:$0xff]
    %v150 = vld [vmem:[#allocation9 + $0x58] sm:$0xff]
    %v151 = vld [vmem:[#allocation9 + $0x60] sm:$0xff]
    %v152 = vld [vmem:[#allocation9 + $0x68] sm:$0xff]
    %v153 = vld [vmem:[#allocation9 + $0x70] sm:$0xff]
    %v154 = vld [vmem:[#allocation9 + $0x78] sm:$0xff]
    %v155 = vld [vmem:[%s4] sm:$0x1]
    %v157 = vperm.slane %v155, 0
    %159 = vmatpush.msra.mxu0 %v122
    %160 = vmatpush.msra.mxu0 %v121
    %161 = vmatpush.msra.mxu0 %v120
    %162 = vmatpush.msra.mxu0 %v119
    %163 = vmatpush.msra.mxu0 %v118
    %164 = vmatpush.msra.mxu0 %v117
    %165 = vmatpush.msra.mxu0 %v116
    %166 = vmatpush.msra.mxu0 %v115
    %167 = vmatpush.msra.mxu0 %v114
    %168 = vmatpush.msra.mxu0 %v113
    %169 = vmatpush.msra.mxu0 %v112
    %170 = vmatpush.msra.mxu0 %v111
    %171 = vmatpush.msra.mxu0 %v110
    %172 = vmatpush.msra.mxu0 %v109
    %173 = vmatpush.msra.mxu0 %v108
    %174 = vmatpush.msra.mxu0 %v107
    %175 = vmatmul.f32.gmra.mxu0 %v91
    %v176 = vpop.f32.mrf.mxu0
    %v177 = vadd.f32 0.0, %v176
    %178 = vmatmul.f32.gmra.mxu0 %v92
    %v179 = vpop.f32.mrf.mxu0
    %v180 = vadd.f32 0.0, %v179
    %181 = vmatmul.f32.gmra.mxu0 %v93
    %v182 = vpop.f32.mrf.mxu0
    %v183 = vadd.f32 0.0, %v182
    %184 = vmatmul.f32.gmra.mxu0 %v94
    %v185 = vpop.f32.mrf.mxu0
    %v186 = vadd.f32 0.0, %v185
    %187 = vmatmul.f32.gmra.mxu0 %v95
    %v188 = vpop.f32.mrf.mxu0
    %v189 = vadd.f32 0.0, %v188
    %190 = vmatmul.f32.gmra.mxu0 %v96
    %v191 = vpop.f32.mrf.mxu0
    %v192 = vadd.f32 0.0, %v191
    %193 = vmatmul.f32.gmra.mxu0 %v97
    %v194 = vpop.f32.mrf.mxu0
    %v195 = vadd.f32 0.0, %v194
    %196 = vmatmul.f32.gmra.mxu0 %v98
    %v197 = vpop.f32.mrf.mxu0
    %v198 = vadd.f32 0.0, %v197
    %199 = vmatmul.f32.gmra.mxu0 %v99
    %v200 = vpop.f32.mrf.mxu0
    %v201 = vadd.f32 0.0, %v200
    %202 = vmatmul.f32.gmra.mxu0 %v100
    %v203 = vpop.f32.mrf.mxu0
    %v204 = vadd.f32 0.0, %v203
    %205 = vmatmul.f32.gmra.mxu0 %v101
    %v206 = vpop.f32.mrf.mxu0
    %v207 = vadd.f32 0.0, %v206
    %208 = vmatmul.f32.gmra.mxu0 %v102
    %v209 = vpop.f32.mrf.mxu0
    %v210 = vadd.f32 0.0, %v209
    %211 = vmatmul.f32.gmra.mxu0 %v103
    %v212 = vpop.f32.mrf.mxu0
    %v213 = vadd.f32 0.0, %v212
    %214 = vmatmul.f32.gmra.mxu0 %v104
    %v215 = vpop.f32.mrf.mxu0
    %v216 = vadd.f32 0.0, %v215
    %217 = vmatmul.f32.gmra.mxu0 %v105
    %v218 = vpop.f32.mrf.mxu0
    %v219 = vadd.f32 0.0, %v218
    %220 = vmatmul.f32.gmra.mxu0 %v106
    %v221 = vpop.f32.mrf.mxu0
    %v222 = vadd.f32 0.0, %v221
    %223 = vdwg.mxu0
    %224 = vmatpush.msra.mxu0 %v154
    %225 = vmatpush.msra.mxu0 %v153
    %226 = vmatpush.msra.mxu0 %v152
    %227 = vmatpush.msra.mxu0 %v151
    %228 = vmatpush.msra.mxu0 %v150
    %229 = vmatpush.msra.mxu0 %v149
    %230 = vmatpush.msra.mxu0 %v148
    %231 = vmatpush.msra.mxu0 %v147
    %232 = vmatpush.msra.mxu0 %v146
    %233 = vmatpush.msra.mxu0 %v145
    %234 = vmatpush.msra.mxu0 %v144
    %235 = vmatpush.msra.mxu0 %v143
    %236 = vmatpush.msra.mxu0 %v142
    %237 = vmatpush.msra.mxu0 %v141
    %238 = vmatpush.msra.mxu0 %v140
    %239 = vmatpush.msra.mxu0 %v139
    %240 = vmatmul.f32.gmra.mxu0 %v177
    %v241 = vpop.f32.mrf.mxu0
    %v242 = vadd.f32 0.0, %v241
    %243 = vmatmul.f32.gmra.mxu0 %v180
    %v244 = vpop.f32.mrf.mxu0
    %v245 = vadd.f32 0.0, %v244
    %246 = vmatmul.f32.gmra.mxu0 %v183
    %v247 = vpop.f32.mrf.mxu0
    %v248 = vadd.f32 0.0, %v247
    %249 = vmatmul.f32.gmra.mxu0 %v186
    %v250 = vpop.f32.mrf.mxu0
    %v251 = vadd.f32 0.0, %v250
    %252 = vmatmul.f32.gmra.mxu0 %v189
    %v253 = vpop.f32.mrf.mxu0
    %v254 = vadd.f32 0.0, %v253
    %255 = vmatmul.f32.gmra.mxu0 %v192
    %v256 = vpop.f32.mrf.mxu0
    %v257 = vadd.f32 0.0, %v256
    %258 = vmatmul.f32.gmra.mxu0 %v195
    %v259 = vpop.f32.mrf.mxu0
    %v260 = vadd.f32 0.0, %v259
    %261 = vmatmul.f32.gmra.mxu0 %v198
    %v262 = vpop.f32.mrf.mxu0
    %v263 = vadd.f32 0.0, %v262
    %264 = vmatmul.f32.gmra.mxu0 %v201
    %v265 = vpop.f32.mrf.mxu0
    %v266 = vadd.f32 0.0, %v265
    %267 = vmatmul.f32.gmra.mxu0 %v204
    %v268 = vpop.f32.mrf.mxu0
    %v269 = vadd.f32 0.0, %v268
    %270 = vmatmul.f32.gmra.mxu0 %v207
    %v271 = vpop.f32.mrf.mxu0
    %v272 = vadd.f32 0.0, %v271
    %273 = vmatmul.f32.gmra.mxu0 %v210
    %v274 = vpop.f32.mrf.mxu0
    %v275 = vadd.f32 0.0, %v274
    %276 = vmatmul.f32.gmra.mxu0 %v213
    %v277 = vpop.f32.mrf.mxu0
    %v278 = vadd.f32 0.0, %v277
    %279 = vmatmul.f32.gmra.mxu0 %v216
    %v280 = vpop.f32.mrf.mxu0
    %v281 = vadd.f32 0.0, %v280
    %282 = vmatmul.f32.gmra.mxu0 %v219
    %v283 = vpop.f32.mrf.mxu0
    %v284 = vadd.f32 0.0, %v283
    %285 = vmatmul.f32.gmra.mxu0 %v222
    %v286 = vpop.f32.mrf.mxu0
    %v287 = vadd.f32 0.0, %v286
    %288 = vdwg.mxu0
    %289 = vmatpush.msra.mxu0 %v138
    %290 = vmatpush.msra.mxu0 %v137
    %291 = vmatpush.msra.mxu0 %v136
    %292 = vmatpush.msra.mxu0 %v135
    %293 = vmatpush.msra.mxu0 %v134
    %294 = vmatpush.msra.mxu0 %v133
    %295 = vmatpush.msra.mxu0 %v132
    %296 = vmatpush.msra.mxu0 %v131
    %297 = vmatpush.msra.mxu0 %v130
    %298 = vmatpush.msra.mxu0 %v129
    %299 = vmatpush.msra.mxu0 %v128
    %300 = vmatpush.msra.mxu0 %v127
    %301 = vmatpush.msra.mxu0 %v126
    %302 = vmatpush.msra.mxu0 %v125
    %303 = vmatpush.msra.mxu0 %v124
    %304 = vmatpush.msra.mxu0 %v123
    %305 = vmatmul.f32.gmra.mxu0 %v107
    %v306 = vpop.f32.mrf.mxu0
    %v307 = vadd.f32 %v242, %v306
    %308 = vmatmul.f32.gmra.mxu0 %v108
    %v309 = vpop.f32.mrf.mxu0
    %v310 = vadd.f32 %v245, %v309
    %311 = vmatmul.f32.gmra.mxu0 %v109
    %v312 = vpop.f32.mrf.mxu0
    %v313 = vadd.f32 %v248, %v312
    %314 = vmatmul.f32.gmra.mxu0 %v110
    %v315 = vpop.f32.mrf.mxu0
    %v316 = vadd.f32 %v251, %v315
    %317 = vmatmul.f32.gmra.mxu0 %v111
    %v318 = vpop.f32.mrf.mxu0
    %v319 = vadd.f32 %v254, %v318
    %320 = vmatmul.f32.gmra.mxu0 %v112
    %v321 = vpop.f32.mrf.mxu0
    %v322 = vadd.f32 %v257, %v321
    %323 = vmatmul.f32.gmra.mxu0 %v113
    %v324 = vpop.f32.mrf.mxu0
    %v325 = vadd.f32 %v260, %v324
    %326 = vmatmul.f32.gmra.mxu0 %v114
    %v327 = vpop.f32.mrf.mxu0
    %v328 = vadd.f32 %v263, %v327
    %329 = vmatmul.f32.gmra.mxu0 %v115
    %v330 = vpop.f32.mrf.mxu0
    %v331 = vadd.f32 %v266, %v330
    %332 = vmatmul.f32.gmra.mxu0 %v116
    %v333 = vpop.f32.mrf.mxu0
    %v334 = vadd.f32 %v269, %v333
    %335 = vmatmul.f32.gmra.mxu0 %v117
    %v336 = vpop.f32.mrf.mxu0
    %v337 = vadd.f32 %v272, %v336
    %338 = vmatmul.f32.gmra.mxu0 %v118
    %v339 = vpop.f32.mrf.mxu0
    %v340 = vadd.f32 %v275, %v339
    %341 = vmatmul.f32.gmra.mxu0 %v119
    %v342 = vpop.f32.mrf.mxu0
    %v343 = vadd.f32 %v278, %v342
    %344 = vmatmul.f32.gmra.mxu0 %v120
    %v345 = vpop.f32.mrf.mxu0
    %v346 = vadd.f32 %v281, %v345
    %347 = vmatmul.f32.gmra.mxu0 %v121
    %v348 = vpop.f32.mrf.mxu0
    %v349 = vadd.f32 %v284, %v348
    %350 = vmatmul.f32.gmra.mxu0 %v122
    %v351 = vpop.f32.mrf.mxu0
    %v352 = vadd.f32 %v287, %v351
    %353 = vdwg.mxu0
    %v354 = vadd.f32 %v307, %v157
    %v355 = vadd.f32 %v310, %v157
    %v356 = vadd.f32 %v313, %v157
    %v357 = vadd.f32 %v316, %v157
    %v358 = vadd.f32 %v319, %v157
    %v359 = vadd.f32 %v322, %v157
    %v360 = vadd.f32 %v325, %v157
    %v361 = vadd.f32 %v328, %v157
    %v362 = vadd.f32 %v331, %v157
    %v363 = vadd.f32 %v334, %v157
    %v364 = vadd.f32 %v337, %v157
    %v365 = vadd.f32 %v340, %v157
    %v366 = vadd.f32 %v343, %v157
    %v367 = vadd.f32 %v346, %v157
    %v368 = vadd.f32 %v349, %v157
    %v369 = vadd.f32 %v352, %v157
    %v370 = vmax.f32 %v354, 0.0
    %v371 = vmax.f32 %v355, 0.0
    %v372 = vmax.f32 %v356, 0.0
    %v373 = vmax.f32 %v357, 0.0
    %v374 = vmax.f32 %v358, 0.0
    %v375 = vmax.f32 %v359, 0.0
    %v376 = vmax.f32 %v360, 0.0
    %v377 = vmax.f32 %v361, 0.0
    %v378 = vmax.f32 %v362, 0.0
    %v379 = vmax.f32 %v363, 0.0
    %v380 = vmax.f32 %v364, 0.0
    %v381 = vmax.f32 %v365, 0.0
    %v382 = vmax.f32 %v366, 0.0
    %v383 = vmax.f32 %v367, 0.0
    %v384 = vmax.f32 %v368, 0.0
    %v385 = vmax.f32 %v369, 0.0
    %386 = vmatpush.msra.mxu0 %v385
    %387 = vmatpush.msra.mxu0 %v384
    %388 = vmatpush.msra.mxu0 %v383
    %389 = vmatpush.msra.mxu0 %v382
    %390 = vmatpush.msra.mxu0 %v381
    %391 = vmatpush.msra.mxu0 %v380
    %392 = vmatpush.msra.mxu0 %v379
    %393 = vmatpush.msra.mxu0 %v378
    %394 = vmatpush.msra.mxu0 %v377
    %395 = vmatpush.msra.mxu0 %v376
    %396 = vmatpush.msra.mxu0 %v375
    %397 = vmatpush.msra.mxu0 %v374
    %398 = vmatpush.msra.mxu0 %v373
    %399 = vmatpush.msra.mxu0 %v372
    %400 = vmatpush.msra.mxu0 %v371
    %401 = vmatpush.msra.mxu0 %v370
    %402 = vmatmul.f32.gmra.mxu0 %v91
    %v403 = vpop.f32.mrf.mxu0
    %v404 = vadd.f32 0.0, %v403
    %405 = vmatmul.f32.gmra.mxu0 %v92
    %v406 = vpop.f32.mrf.mxu0
    %v407 = vadd.f32 0.0, %v406
    %408 = vmatmul.f32.gmra.mxu0 %v93
    %v409 = vpop.f32.mrf.mxu0
    %v410 = vadd.f32 0.0, %v409
    %411 = vmatmul.f32.gmra.mxu0 %v94
    %v412 = vpop.f32.mrf.mxu0
    %v413 = vadd.f32 0.0, %v412
    %414 = vmatmul.f32.gmra.mxu0 %v95
    %v415 = vpop.f32.mrf.mxu0
    %v416 = vadd.f32 0.0, %v415
    %417 = vmatmul.f32.gmra.mxu0 %v96
    %v418 = vpop.f32.mrf.mxu0
    %v419 = vadd.f32 0.0, %v418
    %420 = vmatmul.f32.gmra.mxu0 %v97
    %v421 = vpop.f32.mrf.mxu0
    %v422 = vadd.f32 0.0, %v421
    %423 = vmatmul.f32.gmra.mxu0 %v98
    %v424 = vpop.f32.mrf.mxu0
    %v425 = vadd.f32 0.0, %v424
    %426 = vmatmul.f32.gmra.mxu0 %v99
    %v427 = vpop.f32.mrf.mxu0
    %v428 = vadd.f32 0.0, %v427
    %429 = vmatmul.f32.gmra.mxu0 %v100
    %v430 = vpop.f32.mrf.mxu0
    %v431 = vadd.f32 0.0, %v430
    %432 = vmatmul.f32.gmra.mxu0 %v101
    %v433 = vpop.f32.mrf.mxu0
    %v434 = vadd.f32 0.0, %v433
    %435 = vmatmul.f32.gmra.mxu0 %v102
    %v436 = vpop.f32.mrf.mxu0
    %v437 = vadd.f32 0.0, %v436
    %438 = vmatmul.f32.gmra.mxu0 %v103
    %v439 = vpop.f32.mrf.mxu0
    %v440 = vadd.f32 0.0, %v439
    %441 = vmatmul.f32.gmra.mxu0 %v104
    %v442 = vpop.f32.mrf.mxu0
    %v443 = vadd.f32 0.0, %v442
    %444 = vmatmul.f32.gmra.mxu0 %v105
    %v445 = vpop.f32.mrf.mxu0
    %v446 = vadd.f32 0.0, %v445
    %447 = vmatmul.f32.gmra.mxu0 %v106
    %v448 = vpop.f32.mrf.mxu0
    %v449 = vadd.f32 0.0, %v448
    %450 = vdwg.mxu0
    %451 = vmatpush.msra.mxu0 %v154
    %452 = vmatpush.msra.mxu0 %v153
    %453 = vmatpush.msra.mxu0 %v152
    %454 = vmatpush.msra.mxu0 %v151
    %455 = vmatpush.msra.mxu0 %v150
    %456 = vmatpush.msra.mxu0 %v149
    %457 = vmatpush.msra.mxu0 %v148
    %458 = vmatpush.msra.mxu0 %v147
    %459 = vmatpush.msra.mxu0 %v146
    %460 = vmatpush.msra.mxu0 %v145
    %461 = vmatpush.msra.mxu0 %v144
    %462 = vmatpush.msra.mxu0 %v143
    %463 = vmatpush.msra.mxu0 %v142
    %464 = vmatpush.msra.mxu0 %v141
    %465 = vmatpush.msra.mxu0 %v140
    %466 = vmatpush.msra.mxu0 %v139
    %467 = vmatmul.f32.gmra.mxu0 %v404
    %v468 = vpop.f32.mrf.mxu0
    %v469 = vadd.f32 0.0, %v468
    %470 = vmatmul.f32.gmra.mxu0 %v407
    %v471 = vpop.f32.mrf.mxu0
    %v472 = vadd.f32 0.0, %v471
    %473 = vmatmul.f32.gmra.mxu0 %v410
    %v474 = vpop.f32.mrf.mxu0
    %v475 = vadd.f32 0.0, %v474
    %476 = vmatmul.f32.gmra.mxu0 %v413
    %v477 = vpop.f32.mrf.mxu0
    %v478 = vadd.f32 0.0, %v477
    %479 = vmatmul.f32.gmra.mxu0 %v416
    %v480 = vpop.f32.mrf.mxu0
    %v481 = vadd.f32 0.0, %v480
    %482 = vmatmul.f32.gmra.mxu0 %v419
    %v483 = vpop.f32.mrf.mxu0
    %v484 = vadd.f32 0.0, %v483
    %485 = vmatmul.f32.gmra.mxu0 %v422
    %v486 = vpop.f32.mrf.mxu0
    %v487 = vadd.f32 0.0, %v486
    %488 = vmatmul.f32.gmra.mxu0 %v425
    %v489 = vpop.f32.mrf.mxu0
    %v490 = vadd.f32 0.0, %v489
    %491 = vmatmul.f32.gmra.mxu0 %v428
    %v492 = vpop.f32.mrf.mxu0
    %v493 = vadd.f32 0.0, %v492
    %494 = vmatmul.f32.gmra.mxu0 %v431
    %v495 = vpop.f32.mrf.mxu0
    %v496 = vadd.f32 0.0, %v495
    %497 = vmatmul.f32.gmra.mxu0 %v434
    %v498 = vpop.f32.mrf.mxu0
    %v499 = vadd.f32 0.0, %v498
    %500 = vmatmul.f32.gmra.mxu0 %v437
    %v501 = vpop.f32.mrf.mxu0
    %v502 = vadd.f32 0.0, %v501
    %503 = vmatmul.f32.gmra.mxu0 %v440
    %v504 = vpop.f32.mrf.mxu0
    %v505 = vadd.f32 0.0, %v504
    %506 = vmatmul.f32.gmra.mxu0 %v443
    %v507 = vpop.f32.mrf.mxu0
    %v508 = vadd.f32 0.0, %v507
    %509 = vmatmul.f32.gmra.mxu0 %v446
    %v510 = vpop.f32.mrf.mxu0
    %v511 = vadd.f32 0.0, %v510
    %512 = vmatmul.f32.gmra.mxu0 %v449
    %v513 = vpop.f32.mrf.mxu0
    %v514 = vadd.f32 0.0, %v513
    %515 = vdwg.mxu0
    %516 = vmatpush.msra.mxu0 %v138
    %517 = vmatpush.msra.mxu0 %v137
    %518 = vmatpush.msra.mxu0 %v136
    %519 = vmatpush.msra.mxu0 %v135
    %520 = vmatpush.msra.mxu0 %v134
    %521 = vmatpush.msra.mxu0 %v133
    %522 = vmatpush.msra.mxu0 %v132
    %523 = vmatpush.msra.mxu0 %v131
    %524 = vmatpush.msra.mxu0 %v130
    %525 = vmatpush.msra.mxu0 %v129
    %526 = vmatpush.msra.mxu0 %v128
    %527 = vmatpush.msra.mxu0 %v127
    %528 = vmatpush.msra.mxu0 %v126
    %529 = vmatpush.msra.mxu0 %v125
    %530 = vmatpush.msra.mxu0 %v124
    %531 = vmatpush.msra.mxu0 %v123
    %532 = vmatmul.f32.gmra.mxu0 %v370
    %v533 = vpop.f32.mrf.mxu0
    %v534 = vadd.f32 %v469, %v533
    %535 = vmatmul.f32.gmra.mxu0 %v371
    %v536 = vpop.f32.mrf.mxu0
    %v537 = vadd.f32 %v472, %v536
    %538 = vmatmul.f32.gmra.mxu0 %v372
    %v539 = vpop.f32.mrf.mxu0
    %v540 = vadd.f32 %v475, %v539
    %541 = vmatmul.f32.gmra.mxu0 %v373
    %v542 = vpop.f32.mrf.mxu0
    %v543 = vadd.f32 %v478, %v542
    %544 = vmatmul.f32.gmra.mxu0 %v374
    %v545 = vpop.f32.mrf.mxu0
    %v546 = vadd.f32 %v481, %v545
    %547 = vmatmul.f32.gmra.mxu0 %v375
    %v548 = vpop.f32.mrf.mxu0
    %v549 = vadd.f32 %v484, %v548
    %550 = vmatmul.f32.gmra.mxu0 %v376
    %v551 = vpop.f32.mrf.mxu0
    %v552 = vadd.f32 %v487, %v551
    %553 = vmatmul.f32.gmra.mxu0 %v377
    %v554 = vpop.f32.mrf.mxu0
    %v555 = vadd.f32 %v490, %v554
    %556 = vmatmul.f32.gmra.mxu0 %v378
    %v557 = vpop.f32.mrf.mxu0
    %v558 = vadd.f32 %v493, %v557
    %559 = vmatmul.f32.gmra.mxu0 %v379
    %v560 = vpop.f32.mrf.mxu0
    %v561 = vadd.f32 %v496, %v560
    %562 = vmatmul.f32.gmra.mxu0 %v380
    %v563 = vpop.f32.mrf.mxu0
    %v564 = vadd.f32 %v499, %v563
    %565 = vmatmul.f32.gmra.mxu0 %v381
    %v566 = vpop.f32.mrf.mxu0
    %v567 = vadd.f32 %v502, %v566
    %568 = vmatmul.f32.gmra.mxu0 %v382
    %v569 = vpop.f32.mrf.mxu0
    %v570 = vadd.f32 %v505, %v569
    %571 = vmatmul.f32.gmra.mxu0 %v383
    %v572 = vpop.f32.mrf.mxu0
    %v573 = vadd.f32 %v508, %v572
    %574 = vmatmul.f32.gmra.mxu0 %v384
    %v575 = vpop.f32.mrf.mxu0
    %v576 = vadd.f32 %v511, %v575
    %577 = vmatmul.f32.gmra.mxu0 %v385
    %v578 = vpop.f32.mrf.mxu0
    %v579 = vadd.f32 %v514, %v578
    %580 = vdwg.mxu0
    %v581 = vadd.f32 %v534, %v157
    %v582 = vadd.f32 %v537, %v157
    %v583 = vadd.f32 %v540, %v157
    %v584 = vadd.f32 %v543, %v157
    %v585 = vadd.f32 %v546, %v157
    %v586 = vadd.f32 %v549, %v157
    %v587 = vadd.f32 %v552, %v157
    %v588 = vadd.f32 %v555, %v157
    %v589 = vadd.f32 %v558, %v157
    %v590 = vadd.f32 %v561, %v157
    %v591 = vadd.f32 %v564, %v157
    %v592 = vadd.f32 %v567, %v157
    %v593 = vadd.f32 %v570, %v157
    %v594 = vadd.f32 %v573, %v157
    %v595 = vadd.f32 %v576, %v157
    %v596 = vadd.f32 %v579, %v157
    %v597 = vmax.f32 %v581, 0.0
    %v598 = vmax.f32 %v582, 0.0
    %v599 = vmax.f32 %v583, 0.0
    %v600 = vmax.f32 %v584, 0.0
    %v601 = vmax.f32 %v585, 0.0
    %v602 = vmax.f32 %v586, 0.0
    %v603 = vmax.f32 %v587, 0.0
    %v604 = vmax.f32 %v588, 0.0
    %v605 = vmax.f32 %v589, 0.0
    %v606 = vmax.f32 %v590, 0.0
    %v607 = vmax.f32 %v591, 0.0
    %v608 = vmax.f32 %v592, 0.0
    %v609 = vmax.f32 %v593, 0.0
    %v610 = vmax.f32 %v594, 0.0
    %v611 = vmax.f32 %v595, 0.0
    %v612 = vmax.f32 %v596, 0.0
    %613 = vmatpush.msra.mxu0 %v612
    %614 = vmatpush.msra.mxu0 %v611
    %615 = vmatpush.msra.mxu0 %v610
    %616 = vmatpush.msra.mxu0 %v609
    %617 = vmatpush.msra.mxu0 %v608
    %618 = vmatpush.msra.mxu0 %v607
    %619 = vmatpush.msra.mxu0 %v606
    %620 = vmatpush.msra.mxu0 %v605
    %621 = vmatpush.msra.mxu0 %v604
    %622 = vmatpush.msra.mxu0 %v603
    %623 = vmatpush.msra.mxu0 %v602
    %624 = vmatpush.msra.mxu0 %v601
    %625 = vmatpush.msra.mxu0 %v600
    %626 = vmatpush.msra.mxu0 %v599
    %627 = vmatpush.msra.mxu0 %v598
    %628 = vmatpush.msra.mxu0 %v597
    %629 = vmatmul.f32.gmra.mxu0 %v91
    %v630 = vpop.f32.mrf.mxu0
    %v631 = vadd.f32 0.0, %v630
    %632 = vmatmul.f32.gmra.mxu0 %v92
    %v633 = vpop.f32.mrf.mxu0
    %v634 = vadd.f32 0.0, %v633
    %635 = vmatmul.f32.gmra.mxu0 %v93
    %v636 = vpop.f32.mrf.mxu0
    %v637 = vadd.f32 0.0, %v636
    %638 = vmatmul.f32.gmra.mxu0 %v94
    %v639 = vpop.f32.mrf.mxu0
    %v640 = vadd.f32 0.0, %v639
    %641 = vmatmul.f32.gmra.mxu0 %v95
    %v642 = vpop.f32.mrf.mxu0
    %v643 = vadd.f32 0.0, %v642
    %644 = vmatmul.f32.gmra.mxu0 %v96
    %v645 = vpop.f32.mrf.mxu0
    %v646 = vadd.f32 0.0, %v645
    %647 = vmatmul.f32.gmra.mxu0 %v97
    %v648 = vpop.f32.mrf.mxu0
    %v649 = vadd.f32 0.0, %v648
    %650 = vmatmul.f32.gmra.mxu0 %v98
    %v651 = vpop.f32.mrf.mxu0
    %v652 = vadd.f32 0.0, %v651
    %653 = vmatmul.f32.gmra.mxu0 %v99
    %v654 = vpop.f32.mrf.mxu0
    %v655 = vadd.f32 0.0, %v654
    %656 = vmatmul.f32.gmra.mxu0 %v100
    %v657 = vpop.f32.mrf.mxu0
    %v658 = vadd.f32 0.0, %v657
    %659 = vmatmul.f32.gmra.mxu0 %v101
    %v660 = vpop.f32.mrf.mxu0
    %v661 = vadd.f32 0.0, %v660
    %662 = vmatmul.f32.gmra.mxu0 %v102
    %v663 = vpop.f32.mrf.mxu0
    %v664 = vadd.f32 0.0, %v663
    %665 = vmatmul.f32.gmra.mxu0 %v103
    %v666 = vpop.f32.mrf.mxu0
    %v667 = vadd.f32 0.0, %v666
    %668 = vmatmul.f32.gmra.mxu0 %v104
    %v669 = vpop.f32.mrf.mxu0
    %v670 = vadd.f32 0.0, %v669
    %671 = vmatmul.f32.gmra.mxu0 %v105
    %v672 = vpop.f32.mrf.mxu0
    %v673 = vadd.f32 0.0, %v672
    %674 = vmatmul.f32.gmra.mxu0 %v106
    %v675 = vpop.f32.mrf.mxu0
    %v676 = vadd.f32 0.0, %v675
    %677 = vdwg.mxu0
    %678 = vmatpush.msra.mxu0 %v154
    %679 = vmatpush.msra.mxu0 %v153
    %680 = vmatpush.msra.mxu0 %v152
    %681 = vmatpush.msra.mxu0 %v151
    %682 = vmatpush.msra.mxu0 %v150
    %683 = vmatpush.msra.mxu0 %v149
    %684 = vmatpush.msra.mxu0 %v148
    %685 = vmatpush.msra.mxu0 %v147
    %686 = vmatpush.msra.mxu0 %v146
    %687 = vmatpush.msra.mxu0 %v145
    %688 = vmatpush.msra.mxu0 %v144
    %689 = vmatpush.msra.mxu0 %v143
    %690 = vmatpush.msra.mxu0 %v142
    %691 = vmatpush.msra.mxu0 %v141
    %692 = vmatpush.msra.mxu0 %v140
    %693 = vmatpush.msra.mxu0 %v139
    %694 = vmatmul.f32.gmra.mxu0 %v631
    %v695 = vpop.f32.mrf.mxu0
    %v696 = vadd.f32 0.0, %v695
    %697 = vmatmul.f32.gmra.mxu0 %v634
    %v698 = vpop.f32.mrf.mxu0
    %v699 = vadd.f32 0.0, %v698
    %700 = vmatmul.f32.gmra.mxu0 %v637
    %v701 = vpop.f32.mrf.mxu0
    %v702 = vadd.f32 0.0, %v701
    %703 = vmatmul.f32.gmra.mxu0 %v640
    %v704 = vpop.f32.mrf.mxu0
    %v705 = vadd.f32 0.0, %v704
    %706 = vmatmul.f32.gmra.mxu0 %v643
    %v707 = vpop.f32.mrf.mxu0
    %v708 = vadd.f32 0.0, %v707
    %709 = vmatmul.f32.gmra.mxu0 %v646
    %v710 = vpop.f32.mrf.mxu0
    %v711 = vadd.f32 0.0, %v710
    %712 = vmatmul.f32.gmra.mxu0 %v649
    %v713 = vpop.f32.mrf.mxu0
    %v714 = vadd.f32 0.0, %v713
    %715 = vmatmul.f32.gmra.mxu0 %v652
    %v716 = vpop.f32.mrf.mxu0
    %v717 = vadd.f32 0.0, %v716
    %718 = vmatmul.f32.gmra.mxu0 %v655
    %v719 = vpop.f32.mrf.mxu0
    %v720 = vadd.f32 0.0, %v719
    %721 = vmatmul.f32.gmra.mxu0 %v658
    %v722 = vpop.f32.mrf.mxu0
    %v723 = vadd.f32 0.0, %v722
    %724 = vmatmul.f32.gmra.mxu0 %v661
    %v725 = vpop.f32.mrf.mxu0
    %v726 = vadd.f32 0.0, %v725
    %727 = vmatmul.f32.gmra.mxu0 %v664
    %v728 = vpop.f32.mrf.mxu0
    %v729 = vadd.f32 0.0, %v728
    %730 = vmatmul.f32.gmra.mxu0 %v667
    %v731 = vpop.f32.mrf.mxu0
    %v732 = vadd.f32 0.0, %v731
    %733 = vmatmul.f32.gmra.mxu0 %v670
    %v734 = vpop.f32.mrf.mxu0
    %v735 = vadd.f32 0.0, %v734
    %736 = vmatmul.f32.gmra.mxu0 %v673
    %v737 = vpop.f32.mrf.mxu0
    %v738 = vadd.f32 0.0, %v737
    %739 = vmatmul.f32.gmra.mxu0 %v676
    %v740 = vpop.f32.mrf.mxu0
    %v741 = vadd.f32 0.0, %v740
    %742 = vdwg.mxu0
    %743 = vmatpush.msra.mxu0 %v138
    %744 = vmatpush.msra.mxu0 %v137
    %745 = vmatpush.msra.mxu0 %v136
    %746 = vmatpush.msra.mxu0 %v135
    %747 = vmatpush.msra.mxu0 %v134
    %748 = vmatpush.msra.mxu0 %v133
    %749 = vmatpush.msra.mxu0 %v132
    %750 = vmatpush.msra.mxu0 %v131
    %751 = vmatpush.msra.mxu0 %v130
    %752 = vmatpush.msra.mxu0 %v129
    %753 = vmatpush.msra.mxu0 %v128
    %754 = vmatpush.msra.mxu0 %v127
    %755 = vmatpush.msra.mxu0 %v126
    %756 = vmatpush.msra.mxu0 %v125
    %757 = vmatpush.msra.mxu0 %v124
    %758 = vmatpush.msra.mxu0 %v123
    %759 = vmatmul.f32.gmra.mxu0 %v597
    %v760 = vpop.f32.mrf.mxu0
    %v761 = vadd.f32 %v696, %v760
    %762 = vmatmul.f32.gmra.mxu0 %v598
    %v763 = vpop.f32.mrf.mxu0
    %v764 = vadd.f32 %v699, %v763
    %765 = vmatmul.f32.gmra.mxu0 %v599
    %v766 = vpop.f32.mrf.mxu0
    %v767 = vadd.f32 %v702, %v766
    %768 = vmatmul.f32.gmra.mxu0 %v600
    %v769 = vpop.f32.mrf.mxu0
    %v770 = vadd.f32 %v705, %v769
    %771 = vmatmul.f32.gmra.mxu0 %v601
    %v772 = vpop.f32.mrf.mxu0
    %v773 = vadd.f32 %v708, %v772
    %774 = vmatmul.f32.gmra.mxu0 %v602
    %v775 = vpop.f32.mrf.mxu0
    %v776 = vadd.f32 %v711, %v775
    %777 = vmatmul.f32.gmra.mxu0 %v603
    %v778 = vpop.f32.mrf.mxu0
    %v779 = vadd.f32 %v714, %v778
    %780 = vmatmul.f32.gmra.mxu0 %v604
    %v781 = vpop.f32.mrf.mxu0
    %v782 = vadd.f32 %v717, %v781
    %783 = vmatmul.f32.gmra.mxu0 %v605
    %v784 = vpop.f32.mrf.mxu0
    %v785 = vadd.f32 %v720, %v784
    %786 = vmatmul.f32.gmra.mxu0 %v606
    %v787 = vpop.f32.mrf.mxu0
    %v788 = vadd.f32 %v723, %v787
    %789 = vmatmul.f32.gmra.mxu0 %v607
    %v790 = vpop.f32.mrf.mxu0
    %v791 = vadd.f32 %v726, %v790
    %792 = vmatmul.f32.gmra.mxu0 %v608
    %v793 = vpop.f32.mrf.mxu0
    %v794 = vadd.f32 %v729, %v793
    %795 = vmatmul.f32.gmra.mxu0 %v609
    %v796 = vpop.f32.mrf.mxu0
    %v797 = vadd.f32 %v732, %v796
    %798 = vmatmul.f32.gmra.mxu0 %v610
    %v799 = vpop.f32.mrf.mxu0
    %v800 = vadd.f32 %v735, %v799
    %801 = vmatmul.f32.gmra.mxu0 %v611
    %v802 = vpop.f32.mrf.mxu0
    %v803 = vadd.f32 %v738, %v802
    %804 = vmatmul.f32.gmra.mxu0 %v612
    %v805 = vpop.f32.mrf.mxu0
    %v806 = vadd.f32 %v741, %v805
    %807 = vdwg.mxu0
    %v808 = vadd.f32 %v761, %v157
    %v809 = vadd.f32 %v764, %v157
    %v810 = vadd.f32 %v767, %v157
    %v811 = vadd.f32 %v770, %v157
    %v812 = vadd.f32 %v773, %v157
    %v813 = vadd.f32 %v776, %v157
    %v814 = vadd.f32 %v779, %v157
    %v815 = vadd.f32 %v782, %v157
    %v816 = vadd.f32 %v785, %v157
    %v817 = vadd.f32 %v788, %v157
    %v818 = vadd.f32 %v791, %v157
    %v819 = vadd.f32 %v794, %v157
    %v820 = vadd.f32 %v797, %v157
    %v821 = vadd.f32 %v800, %v157
    %v822 = vadd.f32 %v803, %v157
    %v823 = vadd.f32 %v806, %v157
    %v824 = vmax.f32 %v808, 0.0
    %v825 = vmax.f32 %v809, 0.0
    %v826 = vmax.f32 %v810, 0.0
    %v827 = vmax.f32 %v811, 0.0
    %v828 = vmax.f32 %v812, 0.0
    %v829 = vmax.f32 %v813, 0.0
    %v830 = vmax.f32 %v814, 0.0
    %v831 = vmax.f32 %v815, 0.0
    %v832 = vmax.f32 %v816, 0.0
    %v833 = vmax.f32 %v817, 0.0
    %v834 = vmax.f32 %v818, 0.0
    %v835 = vmax.f32 %v819, 0.0
    %v836 = vmax.f32 %v820, 0.0
    %v837 = vmax.f32 %v821, 0.0
    %v838 = vmax.f32 %v822, 0.0
    %v839 = vmax.f32 %v823, 0.0
    %v840 = vrot.slane %v824, 4
    %v841 = vadd.f32 %v824, %v840
    %v842 = vrot.slane %v841, 2
    %v843 = vadd.f32 %v841, %v842
    %v844 = vrot.slane %v843, 1
    %v845 = vadd.f32 %v843, %v844
    %v846 = vrot.slane %v825, 4
    %v847 = vadd.f32 %v825, %v846
    %v848 = vrot.slane %v847, 2
    %v849 = vadd.f32 %v847, %v848
    %v850 = vrot.slane %v849, 1
    %v851 = vadd.f32 %v849, %v850
    %v852 = vrot.slane %v826, 4
    %v853 = vadd.f32 %v826, %v852
    %v854 = vrot.slane %v853, 2
    %v855 = vadd.f32 %v853, %v854
    %v856 = vrot.slane %v855, 1
    %v857 = vadd.f32 %v855, %v856
    %v858 = vrot.slane %v827, 4
    %v859 = vadd.f32 %v827, %v858
    %v860 = vrot.slane %v859, 2
    %v861 = vadd.f32 %v859, %v860
    %v862 = vrot.slane %v861, 1
    %v863 = vadd.f32 %v861, %v862
    %v864 = vrot.slane %v828, 4
    %v865 = vadd.f32 %v828, %v864
    %v866 = vrot.slane %v865, 2
    %v867 = vadd.f32 %v865, %v866
    %v868 = vrot.slane %v867, 1
    %v869 = vadd.f32 %v867, %v868
    %v870 = vrot.slane %v829, 4
    %v871 = vadd.f32 %v829, %v870
    %v872 = vrot.slane %v871, 2
    %v873 = vadd.f32 %v871, %v872
    %v874 = vrot.slane %v873, 1
    %v875 = vadd.f32 %v873, %v874
    %v876 = vrot.slane %v830, 4
    %v877 = vadd.f32 %v830, %v876
    %v878 = vrot.slane %v877, 2
    %v879 = vadd.f32 %v877, %v878
    %v880 = vrot.slane %v879, 1
    %v881 = vadd.f32 %v879, %v880
    %v882 = vrot.slane %v831, 4
    %v883 = vadd.f32 %v831, %v882
    %v884 = vrot.slane %v883, 2
    %v885 = vadd.f32 %v883, %v884
    %v886 = vrot.slane %v885, 1
    %v887 = vadd.f32 %v885, %v886
    %v888 = vrot.slane %v832, 4
    %v889 = vadd.f32 %v832, %v888
    %v890 = vrot.slane %v889, 2
    %v891 = vadd.f32 %v889, %v890
    %v892 = vrot.slane %v891, 1
    %v893 = vadd.f32 %v891, %v892
    %v894 = vrot.slane %v833, 4
    %v895 = vadd.f32 %v833, %v894
    %v896 = vrot.slane %v895, 2
    %v897 = vadd.f32 %v895, %v896
    %v898 = vrot.slane %v897, 1
    %v899 = vadd.f32 %v897, %v898
    %v900 = vrot.slane %v834, 4
    %v901 = vadd.f32 %v834, %v900
    %v902 = vrot.slane %v901, 2
    %v903 = vadd.f32 %v901, %v902
    %v904 = vrot.slane %v903, 1
    %v905 = vadd.f32 %v903, %v904
    %v906 = vrot.slane %v835, 4
    %v907 = vadd.f32 %v835, %v906
    %v908 = vrot.slane %v907, 2
    %v909 = vadd.f32 %v907, %v908
    %v910 = vrot.slane %v909, 1
    %v911 = vadd.f32 %v909, %v910
    %v912 = vrot.slane %v836, 4
    %v913 = vadd.f32 %v836, %v912
    %v914 = vrot.slane %v913, 2
    %v915 = vadd.f32 %v913, %v914
    %v916 = vrot.slane %v915, 1
    %v917 = vadd.f32 %v915, %v916
    %v918 = vrot.slane %v837, 4
    %v919 = vadd.f32 %v837, %v918
    %v920 = vrot.slane %v919, 2
    %v921 = vadd.f32 %v919, %v920
    %v922 = vrot.slane %v921, 1
    %v923 = vadd.f32 %v921, %v922
    %v924 = vrot.slane %v838, 4
    %v925 = vadd.f32 %v838, %v924
    %v926 = vrot.slane %v925, 2
    %v927 = vadd.f32 %v925, %v926
    %v928 = vrot.slane %v927, 1
    %v929 = vadd.f32 %v927, %v928
    %v930 = vrot.slane %v839, 4
    %v931 = vadd.f32 %v839, %v930
    %v932 = vrot.slane %v931, 2
    %v933 = vadd.f32 %v931, %v932
    %v934 = vrot.slane %v933, 1
    %v935 = vadd.f32 %v933, %v934
    %v936 = vld [vmem:[%s5] sm:$0x1]
    %v938 = vperm.slane %v936, 0
    %v940 = vmul.f32 %v845, %v938
    %v941 = vmul.f32 %v851, %v938
    %v942 = vmul.f32 %v857, %v938
    %v943 = vmul.f32 %v863, %v938
    %v944 = vmul.f32 %v869, %v938
    %v945 = vmul.f32 %v875, %v938
    %v946 = vmul.f32 %v881, %v938
    %v947 = vmul.f32 %v887, %v938
    %v948 = vmul.f32 %v893, %v938
    %v949 = vmul.f32 %v899, %v938
    %v950 = vmul.f32 %v905, %v938
    %v951 = vmul.f32 %v911, %v938
    %v952 = vmul.f32 %v917, %v938
    %v953 = vmul.f32 %v923, %v938
    %v954 = vmul.f32 %v929, %v938
    %v955 = vmul.f32 %v935, %v938
    %v972 = vrot.slane %v941, 7
    %vm973 = vcmask 1041409
    %v974 = vsel %vm973, %v972, %v940
    %v975 = vrot.slane %v942, 6
    %vm976 = vcmask 1042434
    %v977 = vsel %vm976, %v975, %v974
    %v978 = vrot.slane %v943, 5
    %vm979 = vcmask 1043459
    %v980 = vsel %vm979, %v978, %v977
    %v981 = vrot.slane %v944, 4
    %vm982 = vcmask 1044484
    %v983 = vsel %vm982, %v981, %v980
    %v984 = vrot.slane %v945, 3
    %vm985 = vcmask 1045509
    %v986 = vsel %vm985, %v984, %v983
    %v987 = vrot.slane %v946, 2
    %vm988 = vcmask 1046534
    %v989 = vsel %vm988, %v987, %v986
    %v990 = vrot.slane %v947, 1
    %vm991 = vcmask 1047559
    %v992 = vsel %vm991, %v990, %v989
    %v993 = vrot.slane %v949, 7
    %v994 = vsel %vm973, %v993, %v948
    %v995 = vrot.slane %v950, 6
    %v996 = vsel %vm976, %v995, %v994
    %v997 = vrot.slane %v951, 5
    %v998 = vsel %vm979, %v997, %v996
    %v999 = vrot.slane %v952, 4
    %v1000 = vsel %vm982, %v999, %v998
    %v1001 = vrot.slane %v953, 3
    %v1002 = vsel %vm985, %v1001, %v1000
    %v1003 = vrot.slane %v954, 2
    %v1004 = vsel %vm988, %v1003, %v1002
    %v1005 = vrot.slane %v955, 1
    %v1006 = vsel %vm991, %v1005, %v1004
    %1009 = vadd.xlane.f32.xlu0 %v992
    %v1010 = vpop.xlane.xlu0 %1009
    %1011 = vadd.xlane.f32.xlu0 %v1006
    %v1012 = vpop.xlane.xlu0 %1011
    %s1013 = sld [smem:[#allocation2]]
    %v1014 = vstv %s1013
    %v1015 = vadd.f32 %v1010, %v1014
    %v1016 = vadd.f32 %v1012, %v1014
    %1017 = vst [vmem:[#allocation11] sm:$0xff] %v1015
    %1018 = vst [vmem:[#allocation11 + $0x8] sm:$0xff] %v1016
    // Predicated region
    $region46: #{tpu_custom_call.1} parent=1 // pred_check
      _
    $region47: #{tpu_custom_call.1} parent=1 // pred_check_branch
      %1020 = sbr.rel (0) target = $region49
    $region48: #{tpu_custom_call.1} parent=1 // pred_region
      %1022 = vsyncadd [#allocation5], 0
      %s1023 = sshll.u32 [#allocation11], 4
      %s1024 = int_to_ptr.vmem [resolvable:$true] %s1023
      %s1025 = sshll.u32 %s7, 4
      %s1026 = int_to_ptr.hbm [resolvable:$true] %s1025
      %1031 = dma.vmem_to_hbm [thread:$0]  %s1024, 256, %s1026, [#allocation5], 128, 128, 8
    $region49: #{tpu_custom_call.1} parent=1 // pred_fallthru
      _
    // Predicated region
    $region50: #{tpu_custom_call.1} parent=1 // pred_check
      _
    $region51: #{tpu_custom_call.1} parent=1 // pred_check_branch
      %1033 = sbr.rel (0) target = $region53
    $region52: #{tpu_custom_call.1} parent=1 // pred_region
      %1035 = dma.done [#allocation5], 256
    $region53: #{tpu_custom_call.1} parent=1 // pred_fallthru
      _
    %1036 = vsyncpa [#allocation4], 1
    %1037 = vsyncpa [#allocation7], 1
    %1038 = vsyncpa [#allocation10], 1
    %1039 = vsyncpa [#allocation5], 1

</llo_original>
